<compile_context>
chip_gen: v6e
topology: v6e:2x2x1
jax: 0.10.0
libtpu: 0.0.40
codegen_flags: <defaults>
</compile_context>

<pallas_src>
import jax
import jax.numpy as jnp
from jax.experimental import pallas as pl
from jax.experimental.pallas import tpu as pltpu

LANE = 128            # lane-dense last dim (multiple of 128 -> unmasked vst)
MAX_TILE_ROWS = 2048  # up to 2048 x 128 x 4B = 1 MiB f32 per block


def _softclip_kernel(a_ref, z_ref, o_ref):
    # a_ref: SMEM scalar parameter, shape (1,) float32
    # z_ref/o_ref: VMEM tiles of shape (tile_rows, LANE) in the array's native dtype
    a = a_ref[0]
    inv_a = 1.0 / a
    z = z_ref[...].astype(jnp.float32)

    def softplus(x):
        # numerically stable softplus = log(1 + exp(x))
        return jnp.maximum(x, 0.0) + jnp.log1p(jnp.exp(-jnp.abs(x)))

    out = (softplus(a * z) - softplus(a * (z - 1.0))) * inv_a
    o_ref[...] = out.astype(o_ref.dtype)


def _round_up(x, m):
    return ((x + m - 1) // m) * m


def soft_clipping(z: jax.Array, a: jax.Array) -> jax.Array:
    """Apply SoftClipping elementwise via a Pallas TPU kernel.

    z: any-shape float array (output has the same shape & dtype).
    a: shape (1,) float32 sharpness parameter (matches nn.Parameter(torch.tensor([a]))).
    """
    orig_shape = z.shape
    orig_dtype = z.dtype

    flat = z.reshape(-1)                       # native dtype, no up-cast
    n = flat.shape[0]

    # Pad only the lane remainder (skip entirely when n % 128 == 0).
    lane_pad = (-n) % LANE
    if lane_pad:
        flat = jnp.pad(flat, (0, lane_pad))
    rows = flat.shape[0] // LANE
    x2d = flat.reshape(rows, LANE)

    # Row block: big (up to MAX_TILE_ROWS) but never absurdly larger than the array.
    # Must be a multiple of 8 (sublane tile); ragged edge blocks handled by Pallas
    # (padded reads, masked writes) -- no row padding in the wrapper.
    tile_rows = min(MAX_TILE_ROWS, _round_up(rows, 8))
    grid = (pl.cdiv(rows, tile_rows),)

    out2d = pl.pallas_call(
        _softclip_kernel,
        out_shape=jax.ShapeDtypeStruct((rows, LANE), orig_dtype),
        grid_spec=pltpu.PrefetchScalarGridSpec(
            num_scalar_prefetch=0,
            grid=grid,
            in_specs=[
                # scalar parameter `a` in SMEM, same block every step
                pl.BlockSpec(memory_space=pltpu.MemorySpace.SMEM),
                # elementwise data tile, native dtype
                pl.BlockSpec((tile_rows, LANE), lambda i: (i, 0)),
            ],
            out_specs=pl.BlockSpec((tile_rows, LANE), lambda i: (i, 0)),
        ),
        compiler_params=pltpu.CompilerParams(
            dimension_semantics=("parallel",),
        ),
    )(a.astype(jnp.float32), x2d)

    if lane_pad:
        out = out2d.reshape(-1)[:n].reshape(orig_shape)
    else:
        out = out2d.reshape(orig_shape)
    return out


def _reference(z, a):
    a0 = a[0]
    numerator = 1.0 + jnp.exp(a0 * z)
    denominator = 1.0 + jnp.exp(a0 * (z - 1.0))
    return jnp.log(numerator / denominator) / a0


if __name__ == "__main__":
    key = jax.random.PRNGKey(0)
    # NCHW-style example input (elementwise op, layout-agnostic semantics)
    x = jax.random.normal(key, (2, 4, 16, 16), dtype=jnp.float32)
    # Sharpness parameter, matching nn.Parameter(torch.tensor([2.0]))
    a_param = jnp.array([2.0], dtype=jnp.float32)

    y = soft_clipping(x, a_param)
    y = jax.block_until_ready(y)

    y_ref = _reference(x, a_param)
    assert y.shape == x.shape and y.dtype == x.dtype
    assert jnp.allclose(y, y_ref, atol=1e-5, rtol=1e-5)
    print("KERNEL_OK")
</pallas_src>

<mosaic_0001>
module attributes {stable_mosaic.version = 11 : i64} {
  func.func @_softclip_kernel(%arg0: i32, %arg1: memref<1xf32, #tpu.memory_space<smem>>, %arg2: memref<16x128xf32, #tpu.memory_space<vmem>>, %arg3: memref<16x128xf32, #tpu.memory_space<vmem>>) attributes {dimension_semantics = [#tpu.dimension_semantics<parallel>], iteration_bounds = array<i64: 1>, scalar_prefetch = 0 : i64, scratch_operands = 0 : i64, tpu.core_type = #tpu.core_type<tc>, window_params = [{transform_indices = @transform_0, window_bounds = array<i64: 1>}, {transform_indices = @transform_1, window_bounds = array<i64: 16, 128>}, {transform_indices = @transform_2, window_bounds = array<i64: 16, 128>}]} {
    %c0 = arith.constant 0 : index
    %0 = memref.load %arg1[%c0] : memref<1xf32, #tpu.memory_space<smem>>
    %cst = arith.constant 1.000000e+00 : f32
    %1 = arith.divf %cst, %0 : f32
    %c0_0 = arith.constant 0 : index
    %c0_1 = arith.constant 0 : index
    %2 = vector.load %arg2[%c0_0, %c0_1] : memref<16x128xf32, #tpu.memory_space<vmem>>, vector<16x128xf32>
    %3 = vector.broadcast %0 : f32 to vector<16x128xf32>
    %4 = arith.mulf %3, %2 : vector<16x128xf32>
    %cst_2 = arith.constant 0.000000e+00 : f32
    %5 = vector.broadcast %cst_2 : f32 to vector<16x128xf32>
    %6 = arith.maximumf %4, %5 : vector<16x128xf32>
    %7 = math.absf %4 : vector<16x128xf32>
    %cst_3 = arith.constant 0.000000e+00 : f32
    %8 = vector.broadcast %cst_3 : f32 to vector<16x128xf32>
    %9 = arith.subf %8, %7 : vector<16x128xf32>
    %10 = math.exp %9 : vector<16x128xf32>
    %11 = math.log1p %10 : vector<16x128xf32>
    %12 = arith.addf %6, %11 : vector<16x128xf32>
    %cst_4 = arith.constant 1.000000e+00 : f32
    %13 = vector.broadcast %cst_4 : f32 to vector<16x128xf32>
    %14 = arith.subf %2, %13 : vector<16x128xf32>
    %15 = vector.broadcast %0 : f32 to vector<16x128xf32>
    %16 = arith.mulf %15, %14 : vector<16x128xf32>
    %cst_5 = arith.constant 0.000000e+00 : f32
    %17 = vector.broadcast %cst_5 : f32 to vector<16x128xf32>
    %18 = arith.maximumf %16, %17 : vector<16x128xf32>
    %19 = math.absf %16 : vector<16x128xf32>
    %cst_6 = arith.constant 0.000000e+00 : f32
    %20 = vector.broadcast %cst_6 : f32 to vector<16x128xf32>
    %21 = arith.subf %20, %19 : vector<16x128xf32>
    %22 = math.exp %21 : vector<16x128xf32>
    %23 = math.log1p %22 : vector<16x128xf32>
    %24 = arith.addf %18, %23 : vector<16x128xf32>
    %25 = arith.subf %12, %24 : vector<16x128xf32>
    %26 = vector.broadcast %1 : f32 to vector<16x128xf32>
    %27 = arith.mulf %25, %26 : vector<16x128xf32>
    %c0_7 = arith.constant 0 : index
    %c0_8 = arith.constant 0 : index
    %28 = vector.load %arg3[%c0_7, %c0_8] : memref<16x128xf32, #tpu.memory_space<vmem>>, vector<16x128xf32>
    tpu.vector_store %arg3[%c0_7, %c0_8], %27 {strides = array<i32>} : memref<16x128xf32, #tpu.memory_space<vmem>>, vector<16x128xf32>,
    return
  }
  func.func @transform_0(%arg0: i32) -> i32 {
    %c0_i32 = arith.constant 0 : i32
    %c0_i32_0 = arith.constant 0 : i32
    return %c0_i32 : i32
  }
  func.func @transform_1(%arg0: i32) -> (i32, i32) {
    %c0_i32 = arith.constant 0 : i32
    %c0_i32_0 = arith.constant 0 : i32
    return %arg0, %c0_i32 : i32, i32
  }
  func.func @transform_2(%arg0: i32) -> (i32, i32) {
    %c0_i32 = arith.constant 0 : i32
    %c0_i32_0 = arith.constant 0 : i32
    return %arg0, %c0_i32 : i32, i32
  }
}

</mosaic_0001>

<llo_original>
// kernel: tpu_custom_call.1
$region0: #{tpu_custom_call.1}
  #allocation0 [shape = 'u32[]', space=smem, size = 0x4, offset = 0x4, fixed_abs, tag = 'smem constant byte address 0x4 - core index']
  #allocation1 [shape = 'u32[144,128]{1,0:T(1,128)}', space=vmem, size = 0x12000, scoped, tag = 'internal scratch']
  #allocation2 [shape = 'f32[1]{0:T(128)S(6)}', space=smem, size = 0x200, scoped, tag = 'scoped memory for tpu_custom_call.1']
  %s0 = inlined_call_operand.<no memory space> [shape: f32[1], index: 0, kind: input, shape index: {}]
  %s1 = inlined_call_operand.hbm [shape: f32[16,128], index: 1, kind: input, shape index: {}]
  %s2 = inlined_call_operand.hbm [shape: f32[16,128], index: 2, kind: output, shape index: {}]
  %s3 = sld [smem:[#allocation0]]
  $region22: #{tpu_custom_call.1} parent=0
    _
  %s5 = ssub.s32 1, %s3
  %s6 = scalar_select 0, %s5, %s3
  %7 = sst [smem:[#allocation2]] %s0
  $region1: #{tpu_custom_call.1} parent=0
    #allocation3 [shape = 'u8[8192]{0}', space=vmem, size = 0x2000, scoped, tag = 'input window, operand 1, single buffered']
    #allocation4 [shape = 's32[1]{0}', space=sflag, size = 0x4, scoped, tag = 'scoped memory for tpu_custom_call.1']
    #allocation5 [shape = 's32[1]{0}', space=sflag, size = 0x4, scoped, tag = 'scoped memory for tpu_custom_call.1']
    #allocation6 [shape = 'u8[8192]{0}', space=vmem, size = 0x2000, scoped, tag = 'output window, operand 0, single buffered']
    %8 = vsyncpa [#allocation4], 0
    %9 = vsyncpa [#allocation5], 0
    // Predicated region
    $region2: #{tpu_custom_call.1} parent=1 // pred_check
      _
    $region3: #{tpu_custom_call.1} parent=1 // pred_check_branch
      %11 = sbr.rel (0) target = $region5
    $region4: #{tpu_custom_call.1} parent=1 // pred_region
      _
    $region5: #{tpu_custom_call.1} parent=1 // pred_fallthru
      _
    // Predicated region
    $region6: #{tpu_custom_call.1} parent=1 // pred_check
      _
    $region7: #{tpu_custom_call.1} parent=1 // pred_check_branch
      %13 = sbr.rel (0) target = $region9
    $region8: #{tpu_custom_call.1} parent=1 // pred_region
      %s15 = ssub.s32 256, 256
      %16 = vsyncadd [#allocation4], %s15
      %s17 = sshll.u32 [#allocation3], 4
      %s18 = int_to_ptr.vmem [resolvable:$true] %s17
      %23 = dma.hbm_to_vmem [thread:$0]  %s1, 256, %s18, [#allocation4], 128, 128, 8
    $region9: #{tpu_custom_call.1} parent=1 // pred_fallthru
      _
    // Predicated region
    $region10: #{tpu_custom_call.1} parent=1 // pred_check
      _
    $region11: #{tpu_custom_call.1} parent=1 // pred_check_branch
      %25 = sbr.rel (0) target = $region13
    $region12: #{tpu_custom_call.1} parent=1 // pred_region
      %26 = dma.done [#allocation4], 256
    $region13: #{tpu_custom_call.1} parent=1 // pred_fallthru
      _
    %s27 = sld [smem:[#allocation2]]
    %v28 = vstv %s27
    %v29 = vrcp.pop %v28
    %s30 = vtos %v29
    %v31 = vld [vmem:[#allocation3] sm:$0xff]
    %v32 = vld [vmem:[#allocation3 + $0x8] sm:$0xff]
    %v33 = vstv %s27
    %v34 = vmul.f32 %v33, %v31
    %v35 = vmul.f32 %v33, %v32
    %v36 = vmax.f32 %v34, 0.0
    %v37 = vmax.f32 %v35, 0.0
    %v38 = vand.u32 2147483647, %v34
    %v39 = vand.u32 2147483647, %v35
    %v40 = vsub.f32 0.0, %v38
    %v41 = vsub.f32 0.0, %v39
    %v42 = vmul.f32 %v40, 1.442695
    %v43 = vpow.pop %v42
    %v44 = vmul.f32 %v41, 1.442695
    %v45 = vpow.pop %v44
    %v46 = vadd.f32 %v43, 1.0
    %v47 = vlog2.pop %v46
    %v48 = vmul.f32 %v47, 0.6931472
    %v49 = vmul.f32 -0.5, %v43
    %v50 = vadd.f32 %v49, 1.0
    %v51 = vmul.f32 %v50, %v43
    %v52 = vand.u32 2147483647, %v43
    %vm53 = vcmp.lt.f32.partialorder %v52, 0.0004427343
    %v54 = vsel %vm53, %v51, %v48
    %v55 = vadd.f32 %v45, 1.0
    %v56 = vlog2.pop %v55
    %v57 = vmul.f32 %v56, 0.6931472
    %v58 = vmul.f32 -0.5, %v45
    %v59 = vadd.f32 %v58, 1.0
    %v60 = vmul.f32 %v59, %v45
    %v61 = vand.u32 2147483647, %v45
    %vm62 = vcmp.lt.f32.partialorder %v61, 0.0004427343
    %v63 = vsel %vm62, %v60, %v57
    %v64 = vadd.f32 %v36, %v54
    %v65 = vadd.f32 %v37, %v63
    %v66 = vsub.f32 %v31, 1.0
    %v67 = vsub.f32 %v32, 1.0
    %v68 = vmul.f32 %v33, %v66
    %v69 = vmul.f32 %v33, %v67
    %v70 = vmax.f32 %v68, 0.0
    %v71 = vmax.f32 %v69, 0.0
    %v72 = vand.u32 2147483647, %v68
    %v73 = vand.u32 2147483647, %v69
    %v74 = vsub.f32 0.0, %v72
    %v75 = vsub.f32 0.0, %v73
    %v76 = vmul.f32 %v74, 1.442695
    %v77 = vpow.pop %v76
    %v78 = vmul.f32 %v75, 1.442695
    %v79 = vpow.pop %v78
    %v80 = vadd.f32 %v77, 1.0
    %v81 = vlog2.pop %v80
    %v82 = vmul.f32 %v81, 0.6931472
    %v83 = vmul.f32 -0.5, %v77
    %v84 = vadd.f32 %v83, 1.0
    %v85 = vmul.f32 %v84, %v77
    %v86 = vand.u32 2147483647, %v77
    %vm87 = vcmp.lt.f32.partialorder %v86, 0.0004427343
    %v88 = vsel %vm87, %v85, %v82
    %v89 = vadd.f32 %v79, 1.0
    %v90 = vlog2.pop %v89
    %v91 = vmul.f32 %v90, 0.6931472
    %v92 = vmul.f32 -0.5, %v79
    %v93 = vadd.f32 %v92, 1.0
    %v94 = vmul.f32 %v93, %v79
    %v95 = vand.u32 2147483647, %v79
    %vm96 = vcmp.lt.f32.partialorder %v95, 0.0004427343
    %v97 = vsel %vm96, %v94, %v91
    %v98 = vadd.f32 %v70, %v88
    %v99 = vadd.f32 %v71, %v97
    %v100 = vsub.f32 %v64, %v98
    %v101 = vsub.f32 %v65, %v99
    %v102 = vstv %s30
    %v103 = vmul.f32 %v100, %v102
    %v104 = vmul.f32 %v101, %v102
    %105 = vst [vmem:[#allocation6] sm:$0xff] %v103
    %106 = vst [vmem:[#allocation6 + $0x8] sm:$0xff] %v104
    // Predicated region
    $region14: #{tpu_custom_call.1} parent=1 // pred_check
      _
    $region15: #{tpu_custom_call.1} parent=1 // pred_check_branch
      %108 = sbr.rel (0) target = $region17
    $region16: #{tpu_custom_call.1} parent=1 // pred_region
      %s110 = ssub.s32 256, 256
      %111 = vsyncadd [#allocation5], %s110
      %s112 = sshll.u32 [#allocation6], 4
      %s113 = int_to_ptr.vmem [resolvable:$true] %s112
      %118 = dma.vmem_to_hbm [thread:$0]  %s113, 256, %s2, [#allocation5], 128, 128, 8
    $region17: #{tpu_custom_call.1} parent=1 // pred_fallthru
      _
    // Predicated region
    $region18: #{tpu_custom_call.1} parent=1 // pred_check
      _
    $region19: #{tpu_custom_call.1} parent=1 // pred_check_branch
      %120 = sbr.rel (0) target = $region21
    $region20: #{tpu_custom_call.1} parent=1 // pred_region
      %121 = dma.done [#allocation5], 256
    $region21: #{tpu_custom_call.1} parent=1 // pred_fallthru
      _
    %122 = vsyncpa [#allocation4], 1
    %123 = vsyncpa [#allocation5], 1

</llo_original>
